<compile_context>
chip_gen: v6e
topology: v6e:2x2x1
jax: 0.10.0
libtpu: 0.0.40
codegen_flags: <defaults>
</compile_context>

<pallas_src>
import functools
import math

import jax
import jax.numpy as jnp
from jax import lax
from jax.experimental import pallas as pl
from jax.experimental.pallas import tpu as pltpu


# ---------------------------------------------------------------------------
# Hardware / tiling helpers
# ---------------------------------------------------------------------------
def _vmem_capacity_bytes():
    try:
        info = pltpu.get_tpu_info()
        for attr in ("vmem_capacity_bytes", "vmem_bytes", "vmem_size_bytes"):
            v = getattr(info, attr, None)
            if v:
                return int(v)
    except Exception:
        pass
    return 64 * 1024 * 1024   # conservative default: v7x per-TensorCore VMEM


def _round_up(x, m):
    return ((x + m - 1) // m) * m


def _clamp_vmem_limit(budget_bytes):
    cap = _vmem_capacity_bytes()
    return int(min(max(budget_bytes, 16 * 1024 * 1024), int(cap * 0.9)))


def _pick_tile_pad(dim, target, unit):
    """Tile (multiple of `unit`, <= target-ish) for a dim that will be padded up to a
    multiple of the tile.  Prefers a tile near `target` that divides the unit-rounded
    dim (no padding); otherwise pads the dim up to the tile multiple."""
    dim_r = _round_up(dim, unit)
    if dim_r <= target:
        return dim_r
    t = (target // unit) * unit
    lo = max(unit, t // 2)
    while t >= lo:
        if dim_r % t == 0:
            return t
        t -= unit
    return (target // unit) * unit


def _pick_q_tile(T, target):
    """Largest multiple-of-8 divisor of T that is <= target (falls back to full T)."""
    if T <= target:
        return T
    t = (target // 8) * 8
    while t >= 8:
        if T % t == 0:
            return t
        t -= 8
    return T


# ---------------------------------------------------------------------------
# Kernel 1: tiled dense linear  y = x @ w + b
# ---------------------------------------------------------------------------
def _matmul_bias_kernel(x_ref, w_ref, b_ref, o_ref, acc_ref):
    k = pl.program_id(2)

    @pl.when(k == 0)
    def _():
        acc_ref[...] = jnp.zeros_like(acc_ref)

    acc_ref[...] += jnp.dot(x_ref[...], w_ref[...],
                            preferred_element_type=jnp.float32)

    @pl.when(k == pl.num_programs(2) - 1)
    def _():
        o_ref[...] = (acc_ref[...] + b_ref[...]).astype(o_ref.dtype)


def pallas_linear(x, w, b, *, out_dtype=None, tm=None, tn=None, tk=None):
    """x: (M, K), w: (K, N), b: (N,) -> x @ w + b, shape (M, N)."""
    M, K = x.shape
    N = w.shape[1]
    out_dtype = out_dtype if out_dtype is not None else x.dtype

    # Generation-aware defaults: bigger M tiles on 128 MiB-VMEM chips (v5e/v6e),
    # tighter (<=256x256 output tile) on 64 MiB (v7x).
    big_vmem = _vmem_capacity_bytes() >= 96 * 1024 * 1024
    tm = _pick_tile_pad(M, tm or (512 if big_vmem else 256), 8)
    tn = _pick_tile_pad(N, tn or 256, 128)
    tk = _pick_tile_pad(K, tk or 512, 128)

    # Pad ragged dims up to the tile multiple instead of degrading to one giant
    # full-axis block (keeps double-buffered ~roofline-sized tiles).
    Mp, Kp, Np = _round_up(M, tm), _round_up(K, tk), _round_up(N, tn)
    if (Mp, Kp) != (M, K):
        x = jnp.pad(x, ((0, Mp - M), (0, Kp - K)))
    if (Kp, Np) != (K, N):
        w = jnp.pad(w, ((0, Kp - K), (0, Np - N)))
    b2 = b.reshape(1, N).astype(jnp.float32)
    if Np != N:
        b2 = jnp.pad(b2, ((0, 0), (0, Np - N)))

    out_isz = jnp.dtype(out_dtype).itemsize
    # Double-buffered inputs/outputs + f32 accumulator + slack, clamped per-chip.
    vmem_budget = (2 * (tm * tk * x.dtype.itemsize + tk * tn * w.dtype.itemsize
                        + tn * 4 + tm * tn * out_isz)
                   + tm * tn * 4 + (2 << 20))

    cost = pl.CostEstimate(
        flops=2 * Mp * Kp * Np,
        transcendentals=0,
        bytes_accessed=int(x.size * x.dtype.itemsize + w.size * w.dtype.itemsize
                           + b2.size * 4 + Mp * Np * out_isz))

    out = pl.pallas_call(
        _matmul_bias_kernel,
        out_shape=jax.ShapeDtypeStruct((Mp, Np), out_dtype),
        grid=(Mp // tm, Np // tn, Kp // tk),
        in_specs=[
            pl.BlockSpec((tm, tk), lambda i, j, kk: (i, kk)),
            pl.BlockSpec((tk, tn), lambda i, j, kk: (kk, j)),
            pl.BlockSpec((1, tn), lambda i, j, kk: (0, j)),
        ],
        out_specs=pl.BlockSpec((tm, tn), lambda i, j, kk: (i, j)),
        scratch_shapes=[pltpu.VMEM((tm, tn), jnp.float32)],
        compiler_params=pltpu.CompilerParams(
            dimension_semantics=("parallel", "parallel", "arbitrary"),
            vmem_limit_bytes=_clamp_vmem_limit(vmem_budget)),
        cost_estimate=cost,
    )(x, w, b2)
    if (Mp, Np) != (M, N):
        out = out[:M, :N]
    return out


# ---------------------------------------------------------------------------
# Kernel 2: attention over all heads for one (batch, q-tile) grid step
# ---------------------------------------------------------------------------
def _attention_body(q_ref, k_ref, v_ref, o_ref, *, num_heads, head_dim, need_weights):
    """q_ref: (1, tq, E), k_ref/v_ref: (1, S, E), o_ref: (1, tq, E).
    Softmax scale is pre-folded into the Q projection, so scores need no scaling.
    Returns the head-summed probs (tq, S) f32 when need_weights else None."""
    w_acc = None
    for h in range(num_heads):                           # static unroll over heads
        lo = h * head_dim
        hi = lo + head_dim
        # TODO(synk): for Dh not a multiple of 128 these column slices are sub-lane;
        # a head-major projection layout (or Dh=128) would avoid the relayouts.
        qh = q_ref[0, :, lo:hi]                          # (tq, Dh)  bf16
        kh = k_ref[0, :, lo:hi]                          # (S, Dh)   bf16
        # Contract last axes of both operands: no transposed copy of K in VMEM.
        s = lax.dot_general(qh, kh, (((1,), (1,)), ((), ())),
                            preferred_element_type=jnp.float32)       # (tq, S) f32
        m = jnp.max(s, axis=-1, keepdims=True)
        e = jnp.exp(s - m)
        denom = jnp.sum(e, axis=-1, keepdims=True)
        if need_weights:
            p = e * (1.0 / denom)                        # exact: feeds returned weights
            w_acc = p if w_acc is None else w_acc + p
        else:
            p = e * pl.reciprocal(denom, approx=True)    # EUP slot, ~free
        # TODO(synk): attn_dropout is 0.0 (module default, eval mode) -> no-op.
        vh = v_ref[0, :, lo:hi]                          # (S, Dh)
        # Direct per-head store: no outs-list / jnp.concatenate, bounded live ranges.
        o_ref[0, :, lo:hi] = jnp.dot(p.astype(vh.dtype), vh,
                                     preferred_element_type=jnp.float32
                                     ).astype(o_ref.dtype)
    return w_acc


def _attn_kernel_w(q_ref, k_ref, v_ref, o_ref, w_ref, *, num_heads, head_dim):
    w_acc = _attention_body(q_ref, k_ref, v_ref, o_ref, num_heads=num_heads,
                            head_dim=head_dim, need_weights=True)
    w_ref[0] = (w_acc * (1.0 / num_heads)).astype(w_ref.dtype)


def _attn_kernel_nw(q_ref, k_ref, v_ref, o_ref, *, num_heads, head_dim):
    _attention_body(q_ref, k_ref, v_ref, o_ref, num_heads=num_heads,
                    head_dim=head_dim, need_weights=False)


def pallas_attention(q, k, v, *, num_heads, head_dim, col_blocks=(0, 0, 0),
                     need_weights=True, tq=None, out_dtype=None,
                     weights_dtype=jnp.float32):
    """q: (B, T, >=E) and k/v: (B, S, >=E), possibly packed slabs of the SAME array;
    col_blocks are E-sized column-block offsets (0 for unpacked inputs).
    Returns (attn (B, T, E), head-averaged weights (B, T, S) or None)."""
    B, T = q.shape[0], q.shape[1]
    S = k.shape[1]
    E = num_heads * head_dim
    out_dtype = out_dtype if out_dtype is not None else q.dtype
    qc, kc, vc = col_blocks

    big_vmem = _vmem_capacity_bytes() >= 96 * 1024 * 1024
    tq = _pick_q_tile(T, tq or (512 if big_vmem else 256))
    # TODO(synk): for long S, stream K/V in S-tiles flash-style (running max /
    # denominator); the returned full-row weights would then need a rescale pass.

    in_specs = [
        pl.BlockSpec((1, tq, E), lambda b, t: (b, t, qc)),
        pl.BlockSpec((1, S, E), lambda b, t: (b, 0, kc)),
        pl.BlockSpec((1, S, E), lambda b, t: (b, 0, vc)),
    ]
    o_spec = pl.BlockSpec((1, tq, E), lambda b, t: (b, t, 0))
    o_shape = jax.ShapeDtypeStruct((B, T, E), out_dtype)

    isz = q.dtype.itemsize
    w_isz = jnp.dtype(weights_dtype).itemsize
    vmem_budget = (2 * (tq * E * isz + 2 * S * E * isz
                        + tq * E * jnp.dtype(out_dtype).itemsize
                        + (tq * S * w_isz if need_weights else 0))
                   + 4 * tq * S * 4 + (2 << 20))

    cost = pl.CostEstimate(
        flops=4 * B * num_heads * T * S * head_dim,
        transcendentals=B * num_heads * T * S,
        bytes_accessed=int((B * T * E + 2 * B * S * E) * isz
                           + B * T * E * jnp.dtype(out_dtype).itemsize
                           + (B * T * S * w_isz if need_weights else 0)))

    params = pltpu.CompilerParams(
        # Two parallel axes (batch, q-tiles): good megacore load balance on v7x.
        dimension_semantics=("parallel", "parallel"),
        vmem_limit_bytes=_clamp_vmem_limit(vmem_budget))

    if need_weights:
        kern = functools.partial(_attn_kernel_w, num_heads=num_heads, head_dim=head_dim)
        out, w = pl.pallas_call(
            kern,
            out_shape=(o_shape, jax.ShapeDtypeStruct((B, T, S), weights_dtype)),
            grid=(B, T // tq),
            in_specs=in_specs,
            out_specs=(o_spec, pl.BlockSpec((1, tq, S), lambda b, t: (b, t, 0))),
            compiler_params=params,
            cost_estimate=cost,
        )(q, k, v)
        return out, w

    kern = functools.partial(_attn_kernel_nw, num_heads=num_heads, head_dim=head_dim)
    out = pl.pallas_call(
        kern,
        out_shape=o_shape,
        grid=(B, T // tq),
        in_specs=in_specs,
        out_specs=o_spec,
        compiler_params=params,
        cost_estimate=cost,
    )(q, k, v)
    return out, None


# ---------------------------------------------------------------------------
# Parameter init (deterministic, mirrors reset_parameters shapes)
# ---------------------------------------------------------------------------
def xavier_uniform(key, shape):
    fan_out, fan_in = shape  # torch weight layout: (out_features, in_features)
    bound = math.sqrt(6.0 / (fan_in + fan_out))
    return jax.random.uniform(key, shape, jnp.float32, -bound, bound)


def init_params(key, embed_dim):
    k1, k2 = jax.random.split(key)
    return dict(
        in_proj_weight=xavier_uniform(k1, (3 * embed_dim, embed_dim)),   # (3E, E)
        in_proj_bias=jnp.zeros((3 * embed_dim,), jnp.float32),
        out_proj_weight=xavier_uniform(k2, (embed_dim, embed_dim)),      # (E, E)
        out_proj_bias=jnp.zeros((embed_dim,), jnp.float32),
    )


# ---------------------------------------------------------------------------
# Forward pass wrapper
# ---------------------------------------------------------------------------
def multihead_attention(params, query, key, value, num_heads, attn_mask=None,
                        need_weights=True, compute_dtype=jnp.bfloat16):
    # TODO(synk): attn_mask / key_padding_mask / bias_kv / add_zero_attn / dropout
    # paths are not implemented (module defaults, eval mode).
    assert attn_mask is None
    T, B, E = query.shape
    H = num_heads
    Dh = E // H
    assert Dh * H == E
    scaling = Dh ** (-0.5)

    # F.linear(x, W) == x @ W.T.  Fold the 1/sqrt(Dh) scaling into the Q slice of the
    # in-projection (weights + bias) in f32, THEN cast to bf16 for the MXU, so the
    # attention kernel never multiplies the (T, S) score matrix by a scalar.
    qkv_scale = jnp.concatenate([jnp.full((E,), scaling, jnp.float32),
                                 jnp.ones((2 * E,), jnp.float32)])
    w_in_t = (params["in_proj_weight"].T * qkv_scale[None, :]).astype(compute_dtype)  # (E,3E)
    b_in = params["in_proj_bias"].astype(jnp.float32) * qkv_scale                     # (3E,)
    w_out_t = params["out_proj_weight"].T.astype(compute_dtype)                       # (E, E)
    b_out = params["out_proj_bias"].astype(jnp.float32)

    lane_aligned = (E % 128 == 0)   # packed column-block views need 128-lane-aligned E

    # Batch-first layout: one contiguous (T, ...) slab per batch element; the
    # per-head split happens inside the kernel (no per-head transposes).
    q_bt = jnp.transpose(query, (1, 0, 2)).reshape(B * T, E).astype(compute_dtype)

    # NOTE: the fused-QKV fast path keys on Python object identity (same caveat as
    # torch's data_ptr check); equal-but-distinct arrays take the (correct) split path.
    if query is key and key is value:
        # Fused QKV projection: x read from HBM once, one kernel launch.
        qkv = pallas_linear(q_bt, w_in_t, b_in, out_dtype=compute_dtype)   # (B*T, 3E)
        qkv = qkv.reshape(B, T, 3 * E)
        if lane_aligned:
            q_a = k_a = v_a = qkv                    # three views of one packed slab
            cols = (0, 1, 2)
        else:
            q_a, k_a, v_a = qkv[..., :E], qkv[..., E:2 * E], qkv[..., 2 * E:]
            cols = (0, 0, 0)
    else:
        S = key.shape[0]
        k_bt = jnp.transpose(key, (1, 0, 2)).reshape(B * S, E).astype(compute_dtype)
        q_a = pallas_linear(q_bt, w_in_t[:, :E], b_in[:E],
                            out_dtype=compute_dtype).reshape(B, T, E)
        if key is value:
            kv = pallas_linear(k_bt, w_in_t[:, E:], b_in[E:],
                               out_dtype=compute_dtype).reshape(B, S, 2 * E)
            if lane_aligned:
                k_a = v_a = kv
                cols = (0, 0, 1)
            else:
                k_a, v_a = kv[..., :E], kv[..., E:]
                cols = (0, 0, 0)
        else:
            v_bt = jnp.transpose(value, (1, 0, 2)).reshape(B * S, E).astype(compute_dtype)
            k_a = pallas_linear(k_bt, w_in_t[:, E:2 * E], b_in[E:2 * E],
                                out_dtype=compute_dtype).reshape(B, S, E)
            v_a = pallas_linear(v_bt, w_in_t[:, 2 * E:], b_in[2 * E:],
                                out_dtype=compute_dtype).reshape(B, S, E)
            cols = (0, 0, 0)

    attn, attn_weights = pallas_attention(
        q_a, k_a, v_a, num_heads=H, head_dim=Dh, col_blocks=cols,
        need_weights=need_weights, out_dtype=compute_dtype)

    # Output projection on the (B*T, E) slab, back to (T, B, E).
    # TODO(synk): emit bf16 here if downstream tolerates it (halves HBM writeback).
    out = pallas_linear(attn.reshape(B * T, E), w_out_t, b_out, out_dtype=jnp.float32)
    out = jnp.transpose(out.reshape(B, T, E), (1, 0, 2))
    return out, attn_weights   # attn_weights: (B, T, S) head-averaged f32, or None


if __name__ == "__main__":
    # Pure-JAX reference mirroring the kernel's bf16 quantization points (so the
    # comparison isolates algorithmic correctness from quantization noise).
    def ref_forward(params, x, H):
        f32, cd = jnp.float32, jnp.bfloat16
        T, B, E = x.shape
        Dh = E // H
        scaling = Dh ** (-0.5)
        scale_vec = jnp.concatenate([jnp.full((E,), scaling, f32),
                                     jnp.ones((2 * E,), f32)])
        w_in = (params["in_proj_weight"].T * scale_vec[None, :]).astype(cd).astype(f32)
        b_in = params["in_proj_bias"].astype(f32) * scale_vec
        w_out = params["out_proj_weight"].T.astype(cd).astype(f32)
        b_out = params["out_proj_bias"].astype(f32)

        xb = jnp.transpose(x, (1, 0, 2)).reshape(B * T, E).astype(cd).astype(f32)
        qkv = (xb @ w_in + b_in).astype(cd).astype(f32).reshape(B, T, 3 * E)
        q, k, v = qkv[..., :E], qkv[..., E:2 * E], qkv[..., 2 * E:]
        q = q.reshape(B, T, H, Dh).transpose(0, 2, 1, 3)
        k = k.reshape(B, T, H, Dh).transpose(0, 2, 1, 3)
        v = v.reshape(B, T, H, Dh).transpose(0, 2, 1, 3)
        s = jnp.einsum("bhtd,bhsd->bhts", q, k)
        p = jax.nn.softmax(s, axis=-1)
        a = jnp.einsum("bhts,bhsd->bhtd", p.astype(cd).astype(f32), v)
        a = a.transpose(0, 2, 1, 3).reshape(B, T, E).astype(cd).astype(f32)
        o = a.reshape(B * T, E) @ w_out + b_out
        o = jnp.transpose(o.reshape(B, T, E), (1, 0, 2))
        return o, p.mean(axis=1)

    def check(T, B, E, H, need_weights, tag):
        key = jax.random.PRNGKey(0)
        pkey, xkey = jax.random.split(key)
        params = init_params(pkey, E)
        x = jax.random.normal(xkey, (T, B, E), jnp.float32)

        out, attn_w = multihead_attention(params, x, x, x, num_heads=H,
                                          need_weights=need_weights)
        jax.block_until_ready(out)
        assert out.shape == (T, B, E)

        ref_out, ref_w = ref_forward(params, x, H)
        err_o = float(jnp.max(jnp.abs(out - ref_out)))
        assert err_o < 2e-2, (tag, err_o)
        if need_weights:
            jax.block_until_ready(attn_w)
            assert attn_w.shape == (B, T, T)
            err_w = float(jnp.max(jnp.abs(attn_w - ref_w)))
            assert err_w < 1e-2, (tag, err_w)
        else:
            assert attn_w is None

    # Small module shapes (E=32 -> sub-128-lane path, weights requested).
    check(T=8, B=2, E=32, H=4, need_weights=True, tag="small")
    # Lane-aligned E (=128): exercises the packed qkv column-view BlockSpecs and the
    # no-weights kernel variant with approximate softmax reciprocal.
    check(T=16, B=2, E=128, H=2, need_weights=False, tag="aligned")

    print("KERNEL_OK")
</pallas_src>

<mosaic_0001>
module attributes {stable_mosaic.version = 11 : i64} {
  func.func @_matmul_bias_kernel(%arg0: i32, %arg1: i32, %arg2: i32, %arg3: memref<16x128xbf16, #tpu.memory_space<vmem>>, %arg4: memref<128x128xbf16, #tpu.memory_space<vmem>>, %arg5: memref<1x128xf32, #tpu.memory_space<vmem>>, %arg6: memref<16x128xbf16, #tpu.memory_space<vmem>>, %arg7: memref<16x128xf32, #tpu.memory_space<vmem>>) attributes {dimension_semantics = [#tpu.dimension_semantics<parallel>, #tpu.dimension_semantics<parallel>, #tpu.dimension_semantics<arbitrary>], iteration_bounds = array<i64: 1, 1, 1>, scalar_prefetch = 0 : i64, scratch_operands = 1 : i64, tpu.core_type = #tpu.core_type<tc>, window_params = [{transform_indices = @transform_0, window_bounds = array<i64: 16, 128>}, {transform_indices = @transform_1, window_bounds = array<i64: 128, 128>}, {transform_indices = @transform_2, window_bounds = array<i64: 1, 128>}, {transform_indices = @transform_3, window_bounds = array<i64: 16, 128>}]} {
    %c0_i32 = arith.constant 0 : i32
    %0 = arith.cmpi eq, %arg2, %c0_i32 : i32
    %1 = arith.extui %0 : i1 to i32
    %c0_i32_0 = arith.constant 0 : i32
    %2 = arith.cmpi ne, %1, %c0_i32_0 : i32
    scf.if %2 {
      %cst_10 = arith.constant 0.000000e+00 : f32
      %12 = vector.broadcast %cst_10 : f32 to vector<16x128xf32>
      %c0_11 = arith.constant 0 : index
      %c0_12 = arith.constant 0 : index
      %13 = vector.load %arg7[%c0_11, %c0_12] : memref<16x128xf32, #tpu.memory_space<vmem>>, vector<16x128xf32>
      tpu.vector_store %arg7[%c0_11, %c0_12], %12 {strides = array<i32>} : memref<16x128xf32, #tpu.memory_space<vmem>>, vector<16x128xf32>,
    } else {
    }
    %c0 = arith.constant 0 : index
    %c0_1 = arith.constant 0 : index
    %3 = vector.load %arg7[%c0, %c0_1] : memref<16x128xf32, #tpu.memory_space<vmem>>, vector<16x128xf32>
    %c0_2 = arith.constant 0 : index
    %c0_3 = arith.constant 0 : index
    %4 = vector.load %arg3[%c0_2, %c0_3] : memref<16x128xbf16, #tpu.memory_space<vmem>>, vector<16x128xbf16>
    %c0_4 = arith.constant 0 : index
    %c0_5 = arith.constant 0 : index
    %5 = vector.load %arg4[%c0_4, %c0_5] : memref<128x128xbf16, #tpu.memory_space<vmem>>, vector<128x128xbf16>
    %cst = arith.constant dense<0.000000e+00> : vector<16x128xf32>
    %6 = tpu.matmul %4, %5, %cst {dimension_numbers = #tpu.dot_dimension_numbers<[1], [0], [0], [1], [0, 0, 1, 1], [], []>} : vector<16x128xbf16>, vector<128x128xbf16>, vector<16x128xf32> -> vector<16x128xf32>
    %7 = arith.addf %3, %6 : vector<16x128xf32>
    %c0_6 = arith.constant 0 : index
    %c0_7 = arith.constant 0 : index
    %8 = vector.load %arg7[%c0_6, %c0_7] : memref<16x128xf32, #tpu.memory_space<vmem>>, vector<16x128xf32>
    tpu.vector_store %arg7[%c0_6, %c0_7], %7 {strides = array<i32>} : memref<16x128xf32, #tpu.memory_space<vmem>>, vector<16x128xf32>,
    %c0_i32_8 = arith.constant 0 : i32
    %9 = arith.cmpi eq, %arg2, %c0_i32_8 : i32
    %10 = arith.extui %9 : i1 to i32
    %c0_i32_9 = arith.constant 0 : i32
    %11 = arith.cmpi ne, %10, %c0_i32_9 : i32
    scf.if %11 {
      %c0_10 = arith.constant 0 : index
      %c0_11 = arith.constant 0 : index
      %12 = vector.load %arg7[%c0_10, %c0_11] : memref<16x128xf32, #tpu.memory_space<vmem>>, vector<16x128xf32>
      %c0_12 = arith.constant 0 : index
      %c0_13 = arith.constant 0 : index
      %13 = vector.load %arg5[%c0_12, %c0_13] : memref<1x128xf32, #tpu.memory_space<vmem>>, vector<1x128xf32>
      %14 = vector.broadcast %13 : vector<1x128xf32> to vector<16x128xf32>
      %15 = arith.addf %12, %14 : vector<16x128xf32>
      %16 = arith.truncf %15 : vector<16x128xf32> to vector<16x128xbf16>
      %c0_14 = arith.constant 0 : index
      %c0_15 = arith.constant 0 : index
      %17 = vector.load %arg6[%c0_14, %c0_15] : memref<16x128xbf16, #tpu.memory_space<vmem>>, vector<16x128xbf16>
      tpu.vector_store %arg6[%c0_14, %c0_15], %16 {strides = array<i32>} : memref<16x128xbf16, #tpu.memory_space<vmem>>, vector<16x128xbf16>,
    } else {
    }
    return
  }
  func.func @transform_0(%arg0: i32, %arg1: i32, %arg2: i32) -> (i32, i32) {
    %c0_i32 = arith.constant 0 : i32
    return %arg0, %arg2 : i32, i32
  }
  func.func @transform_1(%arg0: i32, %arg1: i32, %arg2: i32) -> (i32, i32) {
    %c0_i32 = arith.constant 0 : i32
    return %arg2, %arg1 : i32, i32
  }
  func.func @transform_2(%arg0: i32, %arg1: i32, %arg2: i32) -> (i32, i32) {
    %c0_i32 = arith.constant 0 : i32
    %c0_i32_0 = arith.constant 0 : i32
    return %c0_i32, %arg1 : i32, i32
  }
  func.func @transform_3(%arg0: i32, %arg1: i32, %arg2: i32) -> (i32, i32) {
    %c0_i32 = arith.constant 0 : i32
    return %arg0, %arg1 : i32, i32
  }
}

</mosaic_0001>

<llo_original>
// kernel: tpu_custom_call.1
$region0: #{tpu_custom_call.1}
  #allocation0 [shape = 'u32[]', space=smem, size = 0x4, offset = 0x4, fixed_abs, tag = 'smem constant byte address 0x4 - core index']
  #allocation1 [shape = 'u32[144,128]{1,0:T(1,128)}', space=vmem, size = 0x12000, scoped, tag = 'internal scratch']
  #allocation2 [shape = 'f32[16,128]{1,0:T(8,128)}', space=vmem, size = 0x2000, scoped, tag = 'scratch operand']
  %s0 = inlined_call_operand.hbm [shape: bf16[16,128], index: 0, kind: input, shape index: {}]
  %s1 = inlined_call_operand.hbm [shape: bf16[128,128], index: 1, kind: input, shape index: {}]
  %s2 = inlined_call_operand.vmem [shape: f32[1,128], index: 2, kind: input, shape index: {}]
  %s3 = inlined_call_operand.hbm [shape: bf16[16,128], index: 3, kind: output, shape index: {}]
  %s4 = sld [smem:[#allocation0]]
  $region38: #{tpu_custom_call.1} parent=0
    _
  %s6 = ssub.s32 1, %s4
  %s7 = scalar_select 0, %s6, %s4
  $region1: #{tpu_custom_call.1} parent=0
    #allocation3 [shape = 'u8[4096]{0}', space=vmem, size = 0x1000, scoped, tag = 'input window, operand 0, single buffered']
    #allocation4 [shape = 's32[1]{0}', space=sflag, size = 0x4, scoped, tag = 'scoped memory for tpu_custom_call.1']
    #allocation5 [shape = 's32[1]{0}', space=sflag, size = 0x4, scoped, tag = 'scoped memory for tpu_custom_call.1']
    #allocation6 [shape = 'u8[32768]{0}', space=vmem, size = 0x8000, scoped, tag = 'input window, operand 1, single buffered']
    #allocation7 [shape = 's32[1]{0}', space=sflag, size = 0x4, scoped, tag = 'scoped memory for tpu_custom_call.1']
    #allocation8 [shape = 'u8[4096]{0}', space=vmem, size = 0x1000, scoped, tag = 'output window, operand 0, single buffered']
    %8 = vsyncpa [#allocation4], 0
    %9 = vsyncpa [#allocation7], 0
    %10 = vsyncpa [#allocation5], 0
    // Predicated region
    $region2: #{tpu_custom_call.1} parent=1 // pred_check
      _
    $region3: #{tpu_custom_call.1} parent=1 // pred_check_branch
      %12 = sbr.rel (0) target = $region5
    $region4: #{tpu_custom_call.1} parent=1 // pred_region
      %s14 = ssub.s32 128, 128
      %15 = vsyncadd [#allocation4], %s14
      %s16 = sshll.u32 [#allocation3], 4
      %s17 = int_to_ptr.vmem [resolvable:$true] %s16
      %22 = dma.hbm_to_vmem [thread:$0]  %s0, 128, %s17, [#allocation4], 64, 64, 4
    $region5: #{tpu_custom_call.1} parent=1 // pred_fallthru
      _
    // Predicated region
    $region6: #{tpu_custom_call.1} parent=1 // pred_check
      _
    $region7: #{tpu_custom_call.1} parent=1 // pred_check_branch
      %24 = sbr.rel (0) target = $region9
    $region8: #{tpu_custom_call.1} parent=1 // pred_region
      %s26 = ssub.s32 1024, 1024
      %27 = vsyncadd [#allocation7], %s26
      %s28 = sshll.u32 [#allocation6], 4
      %s29 = int_to_ptr.vmem [resolvable:$true] %s28
      %34 = dma.hbm_to_vmem [thread:$0]  %s1, 1024, %s29, [#allocation7], 64, 64, 4
    $region9: #{tpu_custom_call.1} parent=1 // pred_fallthru
      _
    // Predicated region
    $region10: #{tpu_custom_call.1} parent=1 // pred_check
      _
    $region11: #{tpu_custom_call.1} parent=1 // pred_check_branch
      %36 = sbr.rel (0) target = $region13
    $region12: #{tpu_custom_call.1} parent=1 // pred_region
      _
    $region13: #{tpu_custom_call.1} parent=1 // pred_fallthru
      _
    // Predicated region
    $region14: #{tpu_custom_call.1} parent=1 // pred_check
      _
    $region15: #{tpu_custom_call.1} parent=1 // pred_check_branch
      %38 = sbr.rel (0) target = $region17
    $region16: #{tpu_custom_call.1} parent=1 // pred_region
      %39 = dma.done [#allocation4], 128
    $region17: #{tpu_custom_call.1} parent=1 // pred_fallthru
      _
    // Predicated region
    $region18: #{tpu_custom_call.1} parent=1 // pred_check
      _
    $region19: #{tpu_custom_call.1} parent=1 // pred_check_branch
      %41 = sbr.rel (0) target = $region21
    $region20: #{tpu_custom_call.1} parent=1 // pred_region
      %42 = dma.done [#allocation7], 1024
    $region21: #{tpu_custom_call.1} parent=1 // pred_fallthru
      _
    %p44 = scmp.eq.s32.totalorder 0, 0
    // Predicated region
    $region22: #{tpu_custom_call.1} parent=1 // pred_check
      %p45 = pneg %p44
    $region23: #{tpu_custom_call.1} parent=1 // pred_check_branch
      %47 = sbr.rel (%p45) target = $region25
    $region24: #{tpu_custom_call.1} parent=1 // pred_region
      %48 = vst [vmem:[#allocation2] sm:$0xff] 0.0
      %49 = vst [vmem:[#allocation2 + $0x8] sm:$0xff] 0.0
    $region25: #{tpu_custom_call.1} parent=1 // pred_fallthru
      _
    %v50 = vld [vmem:[#allocation2] sm:$0xff]
    %v51 = vld [vmem:[#allocation2 + $0x8] sm:$0xff]
    %v52 = vld [vmem:[#allocation3] sm:$0xf]
    %v53 = vld [vmem:[#allocation3 + $0x4] sm:$0xf]
    %v54 = vld [vmem:[#allocation6] sm:$0xf]
    %v55 = vld [vmem:[#allocation6 + $0x4] sm:$0xf]
    %v56 = vld [vmem:[#allocation6 + $0x8] sm:$0xf]
    %v57 = vld [vmem:[#allocation6 + $0xc] sm:$0xf]
    %v58 = vld [vmem:[#allocation6 + $0x10] sm:$0xf]
    %v59 = vld [vmem:[#allocation6 + $0x14] sm:$0xf]
    %v60 = vld [vmem:[#allocation6 + $0x18] sm:$0xf]
    %v61 = vld [vmem:[#allocation6 + $0x1c] sm:$0xf]
    %v62 = vld [vmem:[#allocation6 + $0x20] sm:$0xf]
    %v63 = vld [vmem:[#allocation6 + $0x24] sm:$0xf]
    %v64 = vld [vmem:[#allocation6 + $0x28] sm:$0xf]
    %v65 = vld [vmem:[#allocation6 + $0x2c] sm:$0xf]
    %v66 = vld [vmem:[#allocation6 + $0x30] sm:$0xf]
    %v67 = vld [vmem:[#allocation6 + $0x34] sm:$0xf]
    %v68 = vld [vmem:[#allocation6 + $0x38] sm:$0xf]
    %v69 = vld [vmem:[#allocation6 + $0x3c] sm:$0xf]
    %v72 = vunpack.c.l.b16 %v52
    %v73 = vunpack.c.l.b16 %v53
    %v74 = vpack.c.b16 %v73, %v72
    %v92 = vunpack.c.l.b16 %v54
    %v93 = vunpack.c.l.b16 %v55
    %v94 = vunpack.c.l.b16 %v56
    %v95 = vunpack.c.l.b16 %v57
    %v96 = vunpack.c.l.b16 %v58
    %v97 = vunpack.c.l.b16 %v59
    %v98 = vunpack.c.l.b16 %v60
    %v99 = vunpack.c.l.b16 %v61
    %v100 = vunpack.c.l.b16 %v62
    %v101 = vunpack.c.l.b16 %v63
    %v102 = vunpack.c.l.b16 %v64
    %v103 = vunpack.c.l.b16 %v65
    %v104 = vunpack.c.l.b16 %v66
    %v105 = vunpack.c.l.b16 %v67
    %v106 = vunpack.c.l.b16 %v68
    %v107 = vunpack.c.l.b16 %v69
    %v108 = vpack.c.b16 %v93, %v92
    %v109 = vpack.c.b16 %v95, %v94
    %v110 = vpack.c.b16 %v97, %v96
    %v111 = vpack.c.b16 %v99, %v98
    %v112 = vpack.c.b16 %v101, %v100
    %v113 = vpack.c.b16 %v103, %v102
    %v114 = vpack.c.b16 %v105, %v104
    %v115 = vpack.c.b16 %v107, %v106
    %124 = vmatprep.subr.bf16.mxu0 0
    %125 = vmatpush1.bf16.msra.mxu0 %v115
    %126 = vmatprep.subr.bf16.mxu0 0
    %127 = vmatpush1.bf16.msra.mxu0 %v114
    %128 = vmatprep.subr.bf16.mxu0 0
    %129 = vmatpush1.bf16.msra.mxu0 %v113
    %130 = vmatprep.subr.bf16.mxu0 0
    %131 = vmatpush1.bf16.msra.mxu0 %v112
    %132 = vmatprep.subr.bf16.mxu0 0
    %133 = vmatpush1.bf16.msra.mxu0 %v111
    %134 = vmatprep.subr.bf16.mxu0 0
    %135 = vmatpush1.bf16.msra.mxu0 %v110
    %136 = vmatprep.subr.bf16.mxu0 0
    %137 = vmatpush1.bf16.msra.mxu0 %v109
    %138 = vmatprep.subr.bf16.mxu0 0
    %139 = vmatpush1.bf16.msra.mxu0 %v108
    %140 = vmatprep.subr.bf16.mxu0 0
    %141 = vmatpush2.bf16.msra.mxu0 0
    %142 = vmatprep.subr.bf16.mxu0 0
    %143 = vmatpush2.bf16.msra.mxu0 0
    %144 = vmatprep.subr.bf16.mxu0 0
    %145 = vmatpush2.bf16.msra.mxu0 0
    %146 = vmatprep.subr.bf16.mxu0 0
    %147 = vmatpush2.bf16.msra.mxu0 0
    %148 = vmatprep.subr.bf16.mxu0 0
    %149 = vmatpush2.bf16.msra.mxu0 0
    %150 = vmatprep.subr.bf16.mxu0 0
    %151 = vmatpush2.bf16.msra.mxu0 0
    %152 = vmatprep.subr.bf16.mxu0 0
    %153 = vmatpush2.bf16.msra.mxu0 0
    %154 = vmatprep.subr.bf16.mxu0 0
    %155 = vmatpush2.bf16.msra.mxu0 0
    %156 = vmatprep.mubr.bf16.mxu0 0
    %157 = vmatmul.mubr.bf16.gmra.mxu0 %v74
    %v158 = vpop.f32.mrf.mxu0
    %v159 = vadd.f32 0.0, %v158
    %v160 = vpop.f32.mrf.mxu0
    %v161 = vpop.f32.mrf.mxu0
    %v162 = vadd.f32 0.0, %v161
    %v163 = vpop.f32.mrf.mxu0
    %164 = vdwg.mxu0
    %v165 = vadd.f32 %v50, %v159
    %v166 = vadd.f32 %v51, %v162
    %167 = vst [vmem:[#allocation2] sm:$0xff] %v165
    %168 = vst [vmem:[#allocation2 + $0x8] sm:$0xff] %v166
    // Predicated region
    $region26: #{tpu_custom_call.1} parent=1 // pred_check
      %p169 = pneg %p44
    $region27: #{tpu_custom_call.1} parent=1 // pred_check_branch
      %171 = sbr.rel (%p169) target = $region29
    $region28: #{tpu_custom_call.1} parent=1 // pred_region
      %v172 = vld [vmem:[#allocation2] sm:$0xff]
      %v173 = vld [vmem:[#allocation2 + $0x8] sm:$0xff]
      %v174 = vld [vmem:[%s2] sm:$0x1]
      %v176 = vlaneseq
      %v177 = vshrl.u32 %v176, 7
      %v178 = vsub.s32 0, %v177
      %v179 = vrot.slane %v174, %v178
      %v181 = vadd.f32 %v172, %v179
      %v182 = vadd.f32 %v173, %v179
      %v183 = vpack.c.bf16 %v182, %v181
      %v185 = vunpack.c.l.b16 %v183
      %v186 = vunpack.c.h.b16 %v183
      %v187 = vpack.c.b16 %v185, %v185
      %v188 = vpack.c.b16 %v186, %v186
      %191 = vst [vmem:[#allocation8] sm:$0xf] %v187
      %192 = vst [vmem:[#allocation8 + $0x4] sm:$0xf] %v188
    $region29: #{tpu_custom_call.1} parent=1 // pred_fallthru
      _
    // Predicated region
    $region30: #{tpu_custom_call.1} parent=1 // pred_check
      _
    $region31: #{tpu_custom_call.1} parent=1 // pred_check_branch
      %194 = sbr.rel (0) target = $region33
    $region32: #{tpu_custom_call.1} parent=1 // pred_region
      %s196 = ssub.s32 128, 128
      %197 = vsyncadd [#allocation5], %s196
      %s198 = sshll.u32 [#allocation8], 4
      %s199 = int_to_ptr.vmem [resolvable:$true] %s198
      %204 = dma.vmem_to_hbm [thread:$0]  %s199, 128, %s3, [#allocation5], 64, 64, 4
    $region33: #{tpu_custom_call.1} parent=1 // pred_fallthru
      _
    // Predicated region
    $region34: #{tpu_custom_call.1} parent=1 // pred_check
      _
    $region35: #{tpu_custom_call.1} parent=1 // pred_check_branch
      %206 = sbr.rel (0) target = $region37
    $region36: #{tpu_custom_call.1} parent=1 // pred_region
      %207 = dma.done [#allocation5], 128
    $region37: #{tpu_custom_call.1} parent=1 // pred_fallthru
      _
    %208 = vsyncpa [#allocation4], 1
    %209 = vsyncpa [#allocation7], 1
    %210 = vsyncpa [#allocation5], 1

</llo_original>
